<compile_context>
chip_gen: v7x
topology: tpu7x:2x2x1
jax: 0.10.0
libtpu: 0.0.40
codegen_flags: <defaults>
</compile_context>

<pallas_src>
import jax
import jax.numpy as jnp
from jax.experimental import pallas as pl
from jax.experimental.pallas import tpu as pltpu

_MISH_THRESH = 20.0  # for x > 20, tanh(softplus(x)) == 1.0 to f32 precision


def _mish_kernel(x_ref, o_ref):
    xf = x_ref[...].astype(jnp.float32)
    # tanh(softplus(x)) = w*(w+2) / (w*(w+2) + 2), with w = exp(x).
    # Single transcendental (exp); everything else is VPU work, which is
    # free filler in a memory-bound kernel.
    xs = jnp.minimum(xf, _MISH_THRESH)            # keep exp() in range (no inf)
    w = jnp.exp(xs)
    ww = w * (w + 2.0)
    t = ww / (ww + 2.0)
    y = jnp.where(xf > _MISH_THRESH, xf, xf * t)  # mish(x) -> x for large x
    o_ref[...] = y.astype(o_ref.dtype)


def _sublane_multiple(dtype):
    return {4: 8, 2: 16, 1: 32}.get(jnp.dtype(dtype).itemsize, 8)


def mish(x, *, target_block_bytes=4 * 1024 * 1024):
    """Mish activation on an arbitrarily-shaped array (elementwise)."""
    orig_shape = x.shape
    dtype = x.dtype
    n = x.size
    if n == 0:
        return x

    itemsize = jnp.dtype(dtype).itemsize
    sub = _sublane_multiple(dtype)
    x_flat = jnp.ravel(x)

    # --- lay out as a wide lane-dense (rows, lanes) slab.
    lanes = None
    for cand in (4096, 2048, 1024, 512, 256, 128):
        if n % cand == 0 and (n // cand) % sub == 0:
            lanes = cand
            break

    if lanes is not None:
        rows, pad = n // lanes, 0
        x2d = x_flat.reshape(rows, lanes)          # free reshape, no extra HBM pass
    elif n % 128 == 0 and n * itemsize <= target_block_bytes:
        # Exact lane fit but rows not sublane-aligned: use one full-array
        # block instead of a pad+slice round trip through HBM.
        lanes, rows, pad = 128, n // 128, 0
        x2d = x_flat.reshape(rows, lanes)
    else:
        # Ragged tail: pad up to a full slab (mish(0) == 0 so padding is inert).
        lanes = 1024 if n >= 1024 * sub else 128
        rows = -(-n // lanes)                      # ceil
        rows = -(-rows // sub) * sub               # round up to sublane multiple
        pad = rows * lanes - n
        x2d = jnp.pad(x_flat, (0, pad)).reshape(rows, lanes)

    # --- block rows: ~target_block_bytes per block, rounded to sublane multiple.
    if rows % sub == 0:
        tr = max(sub, (target_block_bytes // (lanes * itemsize)) // sub * sub)
        tr = min(tr, rows)
    else:
        tr = rows                                  # full-dim block is always legal
    grid = (pl.cdiv(rows, tr),)                    # partial last block is masked

    out2d = pl.pallas_call(
        _mish_kernel,
        out_shape=jax.ShapeDtypeStruct((rows, lanes), dtype),
        grid_spec=pltpu.PrefetchScalarGridSpec(
            num_scalar_prefetch=0,
            grid=grid,
            in_specs=[pl.BlockSpec((tr, lanes), lambda i: (i, 0))],
            out_specs=pl.BlockSpec((tr, lanes), lambda i: (i, 0)),
        ),
        compiler_params=pltpu.CompilerParams(
            dimension_semantics=("parallel",),     # shards grid across v7x's 2 TCs
            vmem_limit_bytes=32 * 1024 * 1024),    # headroom for 4 live 4 MiB bufs
    )(x2d)

    if pad:
        return out2d.reshape(-1)[:n].reshape(orig_shape)
    return out2d.reshape(orig_shape)


def _mish_ref(x):
    xf = x.astype(jnp.float32)
    sp = jnp.maximum(xf, 0.0) + jnp.log1p(jnp.exp(-jnp.abs(xf)))
    return (xf * jnp.tanh(sp)).astype(x.dtype)


if __name__ == "__main__":
    # Primary: NCHW like the PyTorch module.
    x = jax.random.normal(jax.random.PRNGKey(0), (2, 4, 16, 16), dtype=jnp.float32) * 3.0
    out = jax.block_until_ready(mish(x))
    ref = _mish_ref(x)
    assert out.shape == x.shape and out.dtype == x.dtype
    assert jnp.allclose(out, ref, atol=1e-6, rtol=1e-5)

    # Ragged element count exercises the tail-pad path.
    x2 = jax.random.normal(jax.random.PRNGKey(1), (3, 5, 7, 11), dtype=jnp.float32) * 5.0
    out2 = jax.block_until_ready(mish(x2))
    assert jnp.allclose(out2, _mish_ref(x2), atol=1e-6, rtol=1e-5)

    # bf16 path (16-sublane alignment).
    x3 = jax.random.normal(jax.random.PRNGKey(2), (2, 4, 16, 16), dtype=jnp.bfloat16)
    out3 = jax.block_until_ready(mish(x3))
    assert out3.shape == x3.shape and out3.dtype == jnp.bfloat16
    assert jnp.allclose(out3.astype(jnp.float32), _mish_ref(x3).astype(jnp.float32),
                        atol=2e-2, rtol=2e-2)

    # Multi-block grid with a partial (sublane-aligned) last block.
    x4 = jax.random.normal(jax.random.PRNGKey(3), (8, 64, 56, 56), dtype=jnp.float32) * 2.0
    out4 = jax.block_until_ready(mish(x4))
    assert jnp.allclose(out4, _mish_ref(x4), atol=1e-6, rtol=1e-5)

    # n % 128 == 0 but rows not sublane-aligned -> single full-array block path.
    x5 = jax.random.normal(jax.random.PRNGKey(4), (2, 5, 128), dtype=jnp.float32) * 4.0
    out5 = jax.block_until_ready(mish(x5))
    assert jnp.allclose(out5, _mish_ref(x5), atol=1e-6, rtol=1e-5)

    print("KERNEL_OK")
</pallas_src>

<mosaic_0001>
module attributes {stable_mosaic.version = 11 : i64} {
  func.func @_mish_kernel(%arg0: i32, %arg1: memref<8x256xf32, #tpu.memory_space<vmem>>, %arg2: memref<8x256xf32, #tpu.memory_space<vmem>>) attributes {dimension_semantics = [#tpu.dimension_semantics<parallel>], iteration_bounds = array<i64: 1>, scalar_prefetch = 0 : i64, scratch_operands = 0 : i64, tpu.core_type = #tpu.core_type<tc>, window_params = [{transform_indices = @transform_0, window_bounds = array<i64: 8, 256>}, {transform_indices = @transform_1, window_bounds = array<i64: 8, 256>}]} {
    %c0 = arith.constant 0 : index
    %c0_0 = arith.constant 0 : index
    %0 = vector.load %arg1[%c0, %c0_0] : memref<8x256xf32, #tpu.memory_space<vmem>>, vector<8x256xf32>
    %cst = arith.constant 2.000000e+01 : f32
    %1 = vector.broadcast %cst : f32 to vector<8x256xf32>
    %2 = arith.minimumf %0, %1 : vector<8x256xf32>
    %3 = math.exp %2 : vector<8x256xf32>
    %cst_1 = arith.constant 2.000000e+00 : f32
    %4 = vector.broadcast %cst_1 : f32 to vector<8x256xf32>
    %5 = arith.addf %3, %4 : vector<8x256xf32>
    %6 = arith.mulf %3, %5 : vector<8x256xf32>
    %cst_2 = arith.constant 2.000000e+00 : f32
    %7 = vector.broadcast %cst_2 : f32 to vector<8x256xf32>
    %8 = arith.addf %6, %7 : vector<8x256xf32>
    %9 = arith.divf %6, %8 : vector<8x256xf32>
    %cst_3 = arith.constant 2.000000e+01 : f32
    %10 = vector.broadcast %cst_3 : f32 to vector<8x256xf32>
    %11 = arith.cmpf ogt, %0, %10 : vector<8x256xf32>
    %12 = arith.mulf %0, %9 : vector<8x256xf32>
    %13 = arith.select %11, %0, %12 : vector<8x256xi1>, vector<8x256xf32>
    %c0_4 = arith.constant 0 : index
    %c0_5 = arith.constant 0 : index
    %14 = vector.load %arg2[%c0_4, %c0_5] : memref<8x256xf32, #tpu.memory_space<vmem>>, vector<8x256xf32>
    tpu.vector_store %arg2[%c0_4, %c0_5], %13 {strides = array<i32>} : memref<8x256xf32, #tpu.memory_space<vmem>>, vector<8x256xf32>,
    return
  }
  func.func @transform_0(%arg0: i32) -> (i32, i32) {
    %c0_i32 = arith.constant 0 : i32
    %c0_i32_0 = arith.constant 0 : i32
    return %arg0, %c0_i32 : i32, i32
  }
  func.func @transform_1(%arg0: i32) -> (i32, i32) {
    %c0_i32 = arith.constant 0 : i32
    %c0_i32_0 = arith.constant 0 : i32
    return %arg0, %c0_i32 : i32, i32
  }
}

</mosaic_0001>

<llo_original>
// kernel: tpu_custom_call.1
$region0: #{tpu_custom_call.1}
  #allocation0 [shape = 'u32[]', space=smem, size = 0x4, offset = 0x4, fixed_abs, tag = 'smem constant byte address 0x4 - core index']
  #allocation1 [shape = 'u32[144,128]{1,0:T(1,128)}', space=vmem, size = 0x12000, scoped, tag = 'internal scratch']
  %s0 = inlined_call_operand.hbm [shape: f32[8,256], index: 0, kind: input, shape index: {}]
  %s1 = inlined_call_operand.hbm [shape: f32[8,256], index: 1, kind: output, shape index: {}]
  %s2 = sld [smem:[#allocation0]]
  $region18: #{tpu_custom_call.1} parent=0
    _
  %s4 = ssub.s32 1, %s2
  %s5 = scalar_select 0, %s4, %s2
  $region1: #{tpu_custom_call.1} parent=0
    #allocation2 [shape = 'u8[8192]{0}', space=vmem, size = 0x2000, scoped, tag = 'input window, operand 0, single buffered']
    #allocation3 [shape = 's32[1]{0}', space=sflag, size = 0x4, scoped, tag = 'scoped memory for tpu_custom_call.1']
    #allocation4 [shape = 's32[1]{0}', space=sflag, size = 0x4, scoped, tag = 'scoped memory for tpu_custom_call.1']
    #allocation5 [shape = 'u8[8192]{0}', space=vmem, size = 0x2000, scoped, tag = 'output window, operand 0, single buffered']
    %6 = vsyncpa [#allocation3], 0
    %7 = vsyncpa [#allocation4], 0
    // Predicated region
    $region2: #{tpu_custom_call.1} parent=1 // pred_check
      _
    $region3: #{tpu_custom_call.1} parent=1 // pred_check_branch
      %9 = sbr.rel (0) target = $region5
    $region4: #{tpu_custom_call.1} parent=1 // pred_region
      %s11 = ssub.s32 256, 256
      %12 = vsyncadd [#allocation3], %s11
      %s14 = sshll.u32 [#allocation2], 4
      %s15 = int_to_ptr.vmem [resolvable:$true] %s14
      %17 = dma.hbm_to_vmem [thread:$0]  %s0, 256, %s15, [#allocation3]
    $region5: #{tpu_custom_call.1} parent=1 // pred_fallthru
      _
    // Predicated region
    $region6: #{tpu_custom_call.1} parent=1 // pred_check
      _
    $region7: #{tpu_custom_call.1} parent=1 // pred_check_branch
      %19 = sbr.rel (0) target = $region9
    $region8: #{tpu_custom_call.1} parent=1 // pred_region
      %20 = dma.done [#allocation3], 256
    $region9: #{tpu_custom_call.1} parent=1 // pred_fallthru
      _
    %v21 = vld [vmem:[#allocation2] sm:$0xff]
    %v22 = vld [vmem:[#allocation2 + $0x8] sm:$0xff]
    %v23 = vmin.f32 %v21, 20.0
    %v24 = vmin.f32 %v22, 20.0
    %v25 = vmul.f32 %v23, 1.442695
    %v26 = vpow.pop %v25
    %v27 = vmul.f32 %v24, 1.442695
    %v28 = vpow.pop %v27
    %v29 = vadd.f32 %v26, 2.0
    %v30 = vadd.f32 %v28, 2.0
    %v31 = vmul.f32 %v26, %v29
    %v32 = vmul.f32 %v28, %v30
    %v33 = vadd.f32 %v31, 2.0
    %v34 = vadd.f32 %v32, 2.0
    %v35 = vrcp.pop %v33
    %v36 = vmul.f32 %v31, %v35
    %v37 = vrcp.pop %v34
    %v38 = vmul.f32 %v32, %v37
    %vm39 = vcmp.gt.f32.partialorder %v21, 20.0
    %vm40 = vcmp.gt.f32.partialorder %v22, 20.0
    %v41 = vmul.f32 %v21, %v36
    %v42 = vmul.f32 %v22, %v38
    %v43 = vsel %vm39, %v21, %v41
    %v44 = vsel %vm40, %v22, %v42
    %45 = vst [vmem:[#allocation5] sm:$0xff] %v43
    %46 = vst [vmem:[#allocation5 + $0x8] sm:$0xff] %v44
    // Predicated region
    $region10: #{tpu_custom_call.1} parent=1 // pred_check
      _
    $region11: #{tpu_custom_call.1} parent=1 // pred_check_branch
      %48 = sbr.rel (0) target = $region13
    $region12: #{tpu_custom_call.1} parent=1 // pred_region
      %s50 = ssub.s32 256, 256
      %51 = vsyncadd [#allocation4], %s50
      %s53 = sshll.u32 [#allocation5], 4
      %s54 = int_to_ptr.vmem [resolvable:$true] %s53
      %56 = dma.vmem_to_hbm [thread:$0]  %s54, 256, %s1, [#allocation4]
    $region13: #{tpu_custom_call.1} parent=1 // pred_fallthru
      _
    // Predicated region
    $region14: #{tpu_custom_call.1} parent=1 // pred_check
      _
    $region15: #{tpu_custom_call.1} parent=1 // pred_check_branch
      %58 = sbr.rel (0) target = $region17
    $region16: #{tpu_custom_call.1} parent=1 // pred_region
      %59 = dma.done [#allocation4], 256
    $region17: #{tpu_custom_call.1} parent=1 // pred_fallthru
      _
    %60 = vsyncpa [#allocation3], 1
    %61 = vsyncpa [#allocation4], 1

</llo_original>
